<compile_context>
chip_gen: v7x
topology: tpu7x:2x2x1
jax: 0.10.0
libtpu: 0.0.40
codegen_flags: <defaults>
</compile_context>

<pallas_src>
import math

import jax
import jax.numpy as jnp
from jax.experimental import pallas as pl
from jax.experimental.pallas import tpu as pltpu


_LANES = 512        # lane-dense last dim (multiple of 128 -> unmasked stores)
_ROW_BLOCK = 512    # (512, 512) f32 tile = 1 MiB/operand; 4 ops x 2 bufs = 8 MiB VMEM


def _sampler_kernel(mu_ref, logvar_ref, eps_ref, out_ref):
    # Pure elementwise: exp on EUP, FMA on VPU; HBM-streaming bound at scale.
    std = jnp.exp(logvar_ref[...] * 0.5)
    out_ref[...] = (eps_ref[...] * std + mu_ref[...]).astype(out_ref.dtype)


def _round_up(x, m):
    return ((x + m - 1) // m) * m


def sampler(mu, logvar, key=None, eps=None):
    """eps * exp(0.5 * logvar) + mu with eps ~ N(0, 1) (or user-supplied eps)."""
    assert mu.shape == logvar.shape and mu.dtype == logvar.dtype
    assert (key is not None) or (eps is not None)
    orig_shape = mu.shape
    total = math.prod(orig_shape)

    # Lane-dense slab layout: (rows, _LANES), rows a multiple of 8.
    rows = max(8, _round_up(-(-total // _LANES), 8))
    padded = rows * _LANES
    row_block = min(_ROW_BLOCK, rows)
    grid = (-(-rows // row_block),)

    def to_slab(x):
        flat = x.reshape(-1).astype(jnp.float32)
        if padded != total:
            flat = jnp.pad(flat, (0, padded - total))
        return flat.reshape(rows, _LANES)

    mu2 = to_slab(mu)
    lv2 = to_slab(logvar)
    if eps is not None:
        eps2 = to_slab(eps)
    else:
        eps2 = jax.random.normal(key, (rows, _LANES), dtype=jnp.float32)

    blk = pl.BlockSpec((row_block, _LANES), lambda i: (i, 0))
    out2 = pl.pallas_call(
        _sampler_kernel,
        out_shape=jax.ShapeDtypeStruct((rows, _LANES), jnp.float32),
        grid=grid,
        in_specs=[blk, blk, blk],
        out_specs=blk,
        compiler_params=pltpu.CompilerParams(
            # Independent row tiles -> shard across v7x's two TensorCores.
            dimension_semantics=("parallel",),
            # Explicit scoped-VMEM budget: well above our ~8 MiB need, safe on
            # v5e (16 MiB default), v6e (128 MiB phys) and v7x (64 MiB phys).
            vmem_limit_bytes=32 * 1024 * 1024,
        ),
    )(mu2, lv2, eps2)

    out = out2.reshape(-1)[:total].reshape(orig_shape).astype(mu.dtype)
    return out


if __name__ == "__main__":
    key = jax.random.PRNGKey(0)
    k_mu, k_lv, k_eps = jax.random.split(key, 3)

    # Small VAE-latent-like shapes, NCHW: batch=2, channels=4, spatial=16x16.
    mu = jax.random.normal(k_mu, (2, 4, 16, 16), dtype=jnp.float32)
    logvar = 0.1 * jax.random.normal(k_lv, (2, 4, 16, 16), dtype=jnp.float32)

    # 1) Exact check against the reference formula with a known eps.
    eps_known = jax.random.normal(k_eps, mu.shape, dtype=jnp.float32)
    out_exact = sampler(mu, logvar, eps=eps_known)
    out_exact = jax.block_until_ready(out_exact)
    ref = eps_known * jnp.exp(0.5 * logvar) + mu
    assert out_exact.shape == mu.shape and out_exact.dtype == mu.dtype
    assert bool(jnp.allclose(out_exact, ref, atol=1e-5, rtol=1e-5))

    # 2) Statistical check with the internal N(0, 1) draw.
    out = sampler(mu, logvar, key=k_eps)
    out = jax.block_until_ready(out)
    assert out.shape == mu.shape and out.dtype == mu.dtype
    assert bool(jnp.all(jnp.isfinite(out)))
    resid = (out - mu) / jnp.exp(0.5 * logvar)  # should look like N(0, 1)
    assert float(jnp.abs(jnp.mean(resid))) < 0.5
    assert 0.5 < float(jnp.std(resid)) < 1.5

    print("KERNEL_OK")
</pallas_src>

<mosaic_0001>
module attributes {stable_mosaic.version = 11 : i64} {
  func.func @_sampler_kernel(%arg0: i32, %arg1: memref<8x512xf32, #tpu.memory_space<vmem>>, %arg2: memref<8x512xf32, #tpu.memory_space<vmem>>, %arg3: memref<8x512xf32, #tpu.memory_space<vmem>>, %arg4: memref<8x512xf32, #tpu.memory_space<vmem>>) attributes {dimension_semantics = [#tpu.dimension_semantics<parallel>], iteration_bounds = array<i64: 1>, scalar_prefetch = 0 : i64, scratch_operands = 0 : i64, tpu.core_type = #tpu.core_type<tc>, window_params = [{transform_indices = @transform_0, window_bounds = array<i64: 8, 512>}, {transform_indices = @transform_1, window_bounds = array<i64: 8, 512>}, {transform_indices = @transform_2, window_bounds = array<i64: 8, 512>}, {transform_indices = @transform_3, window_bounds = array<i64: 8, 512>}]} {
    %c0 = arith.constant 0 : index
    %c0_0 = arith.constant 0 : index
    %0 = vector.load %arg2[%c0, %c0_0] : memref<8x512xf32, #tpu.memory_space<vmem>>, vector<8x512xf32>
    %cst = arith.constant 5.000000e-01 : f32
    %1 = vector.broadcast %cst : f32 to vector<8x512xf32>
    %2 = arith.mulf %0, %1 : vector<8x512xf32>
    %3 = math.exp %2 : vector<8x512xf32>
    %c0_1 = arith.constant 0 : index
    %c0_2 = arith.constant 0 : index
    %4 = vector.load %arg3[%c0_1, %c0_2] : memref<8x512xf32, #tpu.memory_space<vmem>>, vector<8x512xf32>
    %5 = arith.mulf %4, %3 : vector<8x512xf32>
    %c0_3 = arith.constant 0 : index
    %c0_4 = arith.constant 0 : index
    %6 = vector.load %arg1[%c0_3, %c0_4] : memref<8x512xf32, #tpu.memory_space<vmem>>, vector<8x512xf32>
    %7 = arith.addf %5, %6 : vector<8x512xf32>
    %c0_5 = arith.constant 0 : index
    %c0_6 = arith.constant 0 : index
    %8 = vector.load %arg4[%c0_5, %c0_6] : memref<8x512xf32, #tpu.memory_space<vmem>>, vector<8x512xf32>
    tpu.vector_store %arg4[%c0_5, %c0_6], %7 {strides = array<i32>} : memref<8x512xf32, #tpu.memory_space<vmem>>, vector<8x512xf32>,
    return
  }
  func.func @transform_0(%arg0: i32) -> (i32, i32) {
    %c0_i32 = arith.constant 0 : i32
    %c0_i32_0 = arith.constant 0 : i32
    return %arg0, %c0_i32 : i32, i32
  }
  func.func @transform_1(%arg0: i32) -> (i32, i32) {
    %c0_i32 = arith.constant 0 : i32
    %c0_i32_0 = arith.constant 0 : i32
    return %arg0, %c0_i32 : i32, i32
  }
  func.func @transform_2(%arg0: i32) -> (i32, i32) {
    %c0_i32 = arith.constant 0 : i32
    %c0_i32_0 = arith.constant 0 : i32
    return %arg0, %c0_i32 : i32, i32
  }
  func.func @transform_3(%arg0: i32) -> (i32, i32) {
    %c0_i32 = arith.constant 0 : i32
    %c0_i32_0 = arith.constant 0 : i32
    return %arg0, %c0_i32 : i32, i32
  }
}

</mosaic_0001>

<llo_original>
// kernel: tpu_custom_call.1
$region0: #{tpu_custom_call.1}
  #allocation0 [shape = 'u32[]', space=smem, size = 0x4, offset = 0x4, fixed_abs, tag = 'smem constant byte address 0x4 - core index']
  #allocation1 [shape = 'u32[144,128]{1,0:T(1,128)}', space=vmem, size = 0x12000, scoped, tag = 'internal scratch']
  %s0 = inlined_call_operand.hbm [shape: f32[8,512], index: 0, kind: input, shape index: {}]
  %s1 = inlined_call_operand.hbm [shape: f32[8,512], index: 1, kind: input, shape index: {}]
  %s2 = inlined_call_operand.hbm [shape: f32[8,512], index: 2, kind: input, shape index: {}]
  %s3 = inlined_call_operand.hbm [shape: f32[8,512], index: 3, kind: output, shape index: {}]
  %s4 = sld [smem:[#allocation0]]
  $region34: #{tpu_custom_call.1} parent=0
    _
  %s6 = ssub.s32 1, %s4
  %s7 = scalar_select 0, %s6, %s4
  $region1: #{tpu_custom_call.1} parent=0
    #allocation2 [shape = 'u8[16384]{0}', space=vmem, size = 0x4000, scoped, tag = 'input window, operand 0, single buffered']
    #allocation3 [shape = 's32[1]{0}', space=sflag, size = 0x4, scoped, tag = 'scoped memory for tpu_custom_call.1']
    #allocation4 [shape = 's32[1]{0}', space=sflag, size = 0x4, scoped, tag = 'scoped memory for tpu_custom_call.1']
    #allocation5 [shape = 'u8[16384]{0}', space=vmem, size = 0x4000, scoped, tag = 'input window, operand 1, single buffered']
    #allocation6 [shape = 's32[1]{0}', space=sflag, size = 0x4, scoped, tag = 'scoped memory for tpu_custom_call.1']
    #allocation7 [shape = 'u8[16384]{0}', space=vmem, size = 0x4000, scoped, tag = 'input window, operand 2, single buffered']
    #allocation8 [shape = 'u8[16384]{0}', space=vmem, size = 0x4000, scoped, tag = 'output window, operand 0, single buffered']
    %8 = vsyncpa [#allocation3], 0
    %9 = vsyncpa [#allocation6], 0
    %10 = vsyncpa [#allocation4], 0
    // Predicated region
    $region2: #{tpu_custom_call.1} parent=1 // pred_check
      _
    $region3: #{tpu_custom_call.1} parent=1 // pred_check_branch
      %12 = sbr.rel (0) target = $region5
    $region4: #{tpu_custom_call.1} parent=1 // pred_region
      %s14 = ssub.s32 512, 512
      %15 = vsyncadd [#allocation3], %s14
      %s17 = sshll.u32 [#allocation2], 4
      %s18 = int_to_ptr.vmem [resolvable:$true] %s17
      %20 = dma.hbm_to_vmem [thread:$0]  %s0, 512, %s18, [#allocation3]
    $region5: #{tpu_custom_call.1} parent=1 // pred_fallthru
      _
    // Predicated region
    $region6: #{tpu_custom_call.1} parent=1 // pred_check
      _
    $region7: #{tpu_custom_call.1} parent=1 // pred_check_branch
      %22 = sbr.rel (0) target = $region9
    $region8: #{tpu_custom_call.1} parent=1 // pred_region
      %s24 = ssub.s32 512, 512
      %25 = vsyncadd [#allocation6], %s24
      %s27 = sshll.u32 [#allocation5], 4
      %s28 = int_to_ptr.vmem [resolvable:$true] %s27
      %30 = dma.hbm_to_vmem [thread:$0]  %s1, 512, %s28, [#allocation6]
    $region9: #{tpu_custom_call.1} parent=1 // pred_fallthru
      _
    // Predicated region
    $region10: #{tpu_custom_call.1} parent=1 // pred_check
      _
    $region11: #{tpu_custom_call.1} parent=1 // pred_check_branch
      %32 = sbr.rel (0) target = $region13
    $region12: #{tpu_custom_call.1} parent=1 // pred_region
      %s34 = ssub.s32 512, 512
      %35 = vsyncadd [#allocation6], %s34
      %s37 = sshll.u32 [#allocation7], 4
      %s38 = int_to_ptr.vmem [resolvable:$true] %s37
      %40 = dma.hbm_to_vmem [thread:$0]  %s2, 512, %s38, [#allocation6]
    $region13: #{tpu_custom_call.1} parent=1 // pred_fallthru
      _
    // Predicated region
    $region14: #{tpu_custom_call.1} parent=1 // pred_check
      _
    $region15: #{tpu_custom_call.1} parent=1 // pred_check_branch
      %42 = sbr.rel (0) target = $region17
    $region16: #{tpu_custom_call.1} parent=1 // pred_region
      %43 = dma.done [#allocation3], 512
    $region17: #{tpu_custom_call.1} parent=1 // pred_fallthru
      _
    // Predicated region
    $region18: #{tpu_custom_call.1} parent=1 // pred_check
      _
    $region19: #{tpu_custom_call.1} parent=1 // pred_check_branch
      %45 = sbr.rel (0) target = $region21
    $region20: #{tpu_custom_call.1} parent=1 // pred_region
      %46 = dma.done [#allocation6], 512
    $region21: #{tpu_custom_call.1} parent=1 // pred_fallthru
      _
    // Predicated region
    $region22: #{tpu_custom_call.1} parent=1 // pred_check
      _
    $region23: #{tpu_custom_call.1} parent=1 // pred_check_branch
      %48 = sbr.rel (0) target = $region25
    $region24: #{tpu_custom_call.1} parent=1 // pred_region
      %49 = dma.done [#allocation6], 512
    $region25: #{tpu_custom_call.1} parent=1 // pred_fallthru
      _
    %v50 = vld [vmem:[#allocation5] sm:$0xff]
    %v51 = vld [vmem:[#allocation5 + $0x8] sm:$0xff]
    %v52 = vld [vmem:[#allocation5 + $0x10] sm:$0xff]
    %v53 = vld [vmem:[#allocation5 + $0x18] sm:$0xff]
    %v54 = vmul.f32 %v50, 0.5
    %v55 = vmul.f32 %v51, 0.5
    %v56 = vmul.f32 %v52, 0.5
    %v57 = vmul.f32 %v53, 0.5
    %v58 = vmul.f32 %v54, 1.442695
    %v59 = vpow.pop %v58
    %v60 = vmul.f32 %v55, 1.442695
    %v61 = vpow.pop %v60
    %v62 = vmul.f32 %v56, 1.442695
    %v63 = vpow.pop %v62
    %v64 = vmul.f32 %v57, 1.442695
    %v65 = vpow.pop %v64
    %v66 = vld [vmem:[#allocation7] sm:$0xff]
    %v67 = vld [vmem:[#allocation7 + $0x8] sm:$0xff]
    %v68 = vld [vmem:[#allocation7 + $0x10] sm:$0xff]
    %v69 = vld [vmem:[#allocation7 + $0x18] sm:$0xff]
    %v70 = vmul.f32 %v66, %v59
    %v71 = vmul.f32 %v67, %v61
    %v72 = vmul.f32 %v68, %v63
    %v73 = vmul.f32 %v69, %v65
    %v74 = vld [vmem:[#allocation2] sm:$0xff]
    %v75 = vld [vmem:[#allocation2 + $0x8] sm:$0xff]
    %v76 = vld [vmem:[#allocation2 + $0x10] sm:$0xff]
    %v77 = vld [vmem:[#allocation2 + $0x18] sm:$0xff]
    %v78 = vadd.f32 %v70, %v74
    %v79 = vadd.f32 %v71, %v75
    %v80 = vadd.f32 %v72, %v76
    %v81 = vadd.f32 %v73, %v77
    %82 = vst [vmem:[#allocation8] sm:$0xff] %v78
    %83 = vst [vmem:[#allocation8 + $0x8] sm:$0xff] %v79
    %84 = vst [vmem:[#allocation8 + $0x10] sm:$0xff] %v80
    %85 = vst [vmem:[#allocation8 + $0x18] sm:$0xff] %v81
    // Predicated region
    $region26: #{tpu_custom_call.1} parent=1 // pred_check
      _
    $region27: #{tpu_custom_call.1} parent=1 // pred_check_branch
      %87 = sbr.rel (0) target = $region29
    $region28: #{tpu_custom_call.1} parent=1 // pred_region
      %s89 = ssub.s32 512, 512
      %90 = vsyncadd [#allocation4], %s89
      %s92 = sshll.u32 [#allocation8], 4
      %s93 = int_to_ptr.vmem [resolvable:$true] %s92
      %95 = dma.vmem_to_hbm [thread:$0]  %s93, 512, %s3, [#allocation4]
    $region29: #{tpu_custom_call.1} parent=1 // pred_fallthru
      _
    // Predicated region
    $region30: #{tpu_custom_call.1} parent=1 // pred_check
      _
    $region31: #{tpu_custom_call.1} parent=1 // pred_check_branch
      %97 = sbr.rel (0) target = $region33
    $region32: #{tpu_custom_call.1} parent=1 // pred_region
      %98 = dma.done [#allocation4], 512
    $region33: #{tpu_custom_call.1} parent=1 // pred_fallthru
      _
    %99 = vsyncpa [#allocation3], 1
    %100 = vsyncpa [#allocation6], 1
    %101 = vsyncpa [#allocation4], 1

</llo_original>
